<compile_context>
chip_gen: v7x
topology: tpu7x:2x2x1
jax: 0.10.0
libtpu: 0.0.40
codegen_flags: <defaults>
</compile_context>

<pallas_src>
import math
from functools import partial

import jax
import jax.numpy as jnp
from jax import lax
from jax.experimental import pallas as pl
from jax.experimental.pallas import tpu as pltpu

_INV_SQRT2 = 1.0 / math.sqrt(2.0)


def _gelu(v):
    # exact GELU, matches torch.nn.GELU() default (erf-based)
    return 0.5 * v * (1.0 + jax.lax.erf(v * _INV_SQRT2))


def plasma_kernel(x_ref, w_enc_ref, b_enc_ref, wt_ref, wx_ref, b_ode_ref,
                  w_dec_t_ref, b_dec_t_ref, ot_ref, *, n_ode_layers):
    # ----- encoder: Linear + GELU -----
    x = x_ref[...]                                   # (TILE_B, in)
    h0 = _gelu(
        jnp.dot(x, w_enc_ref[...], preferred_element_type=jnp.float32)
        + b_enc_ref[...]
    )

    # ----- ODE function weights (single shared copy; deepcopy => identical) -----
    wx = wx_ref[...]                                 # (H, H)
    wt = wt_ref[...]                                 # (1, H)  t-coefficient row
    b = b_ode_ref[...]                               # (1, H)

    # Hoisted stage-constant biases: t*wt + b for the 4 RK stage times.
    bias_t0 = b
    bias_t13 = wt * (1.0 / 3.0) + b
    bias_t23 = wt * (2.0 / 3.0) + b
    bias_t1 = wt + b

    def odefunc(bias, y):
        for _ in range(n_ode_layers):                # small static unroll
            y = _gelu(jnp.dot(y, wx, preferred_element_type=jnp.float32) + bias)
        return y

    # ----- single RK4 (3/8-rule) step from t=0 to t=1 (dt = 1) -----
    k1 = odefunc(bias_t0, h0)
    k2 = odefunc(bias_t13, h0 + k1 * (1.0 / 3.0))
    k3 = odefunc(bias_t23, h0 + (k2 - k1 * (1.0 / 3.0)))
    k4 = odefunc(bias_t1, h0 + (k1 - k2 + k3))
    h1 = h0 + (k1 + 3.0 * (k2 + k3) + k4) * 0.125

    # ----- decoder, produced transposed so the store is lane-dense -----
    # (out, H) contracted with (TILE_B, H) on H  ->  (out, TILE_B)
    o_t = lax.dot_general(
        w_dec_t_ref[...], h1,
        dimension_numbers=(((1,), (1,)), ((), ())),
        preferred_element_type=jnp.float32,
    ) + b_dec_t_ref[...]                             # (out, 1) broadcast over lanes
    ot_ref[...] = o_t.astype(ot_ref.dtype)


def plasma_forward(x, params, *, tile_b=None):
    """x: (batch, in_feature) float32 -> (batch, out_feature) float32."""
    batch, in_feature = x.shape
    hidden = params["wx_ode"].shape[0]
    out_feature = params["w_dec"].shape[1]
    L = params["n_ode_layers"]

    # Batch tile: big enough to amortize per-step overhead, small enough for
    # the v7x 32 MiB scoped-VMEM default (512*32 f32 intermediates << 1 MiB).
    if tile_b is None:
        tile_b = 512 if batch >= 512 else max(8, ((batch + 7) // 8) * 8)
    padded = pl.cdiv(batch, tile_b) * tile_b
    if padded != batch:
        x = jnp.pad(x, ((0, padded - batch), (0, 0)))

    # decoder weights pre-transposed so the kernel emits a lane-dense
    # (out_feature, TILE_B) slab.
    w_dec_t = params["w_dec"].T                      # (out, hidden)
    b_dec_t = params["b_dec"].T                      # (out, 1)

    const = lambda i: (0, 0)

    flops = 2 * padded * (in_feature * hidden
                          + 4 * L * hidden * hidden
                          + hidden * out_feature)
    transcendentals = padded * hidden * (1 + 4 * L)          # erf calls
    bytes_accessed = 4 * (padded * (in_feature + out_feature)
                          + in_feature * hidden + hidden      # encoder
                          + (hidden + 2) * hidden             # ODE wx/wt/b
                          + (hidden + 1) * out_feature)       # decoder

    out_t = pl.pallas_call(
        partial(plasma_kernel, n_ode_layers=L),
        out_shape=jax.ShapeDtypeStruct((out_feature, padded), jnp.float32),
        grid=(padded // tile_b,),
        in_specs=[
            pl.BlockSpec((tile_b, in_feature), lambda i: (i, 0)),   # x tile
            pl.BlockSpec((in_feature, hidden), const),              # w_enc (resident)
            pl.BlockSpec((1, hidden), const),                       # b_enc
            pl.BlockSpec((1, hidden), const),                       # wt_ode
            pl.BlockSpec((hidden, hidden), const),                  # wx_ode
            pl.BlockSpec((1, hidden), const),                       # b_ode
            pl.BlockSpec((out_feature, hidden), const),             # w_dec^T
            pl.BlockSpec((out_feature, 1), const),                  # b_dec^T
        ],
        out_specs=pl.BlockSpec((out_feature, tile_b), lambda i: (0, i)),
        compiler_params=pltpu.CompilerParams(
            dimension_semantics=("parallel",)),
        cost_estimate=pl.CostEstimate(
            flops=flops,
            transcendentals=transcendentals,
            bytes_accessed=bytes_accessed),
    )(
        x,
        params["w_enc"], params["b_enc"],
        params["wt_ode"], params["wx_ode"], params["b_ode"],
        w_dec_t, b_dec_t,
    )
    return out_t.T[:batch]


def init_params(key, in_feature, hidden, out_feature, nlayer):
    """Deterministic init mimicking torch.nn.Linear U(-1/sqrt(fan_in), 1/sqrt(fan_in)).
    The (nlayer-1) LinearT layers are deep copies -> store exactly one copy."""
    L = nlayer - 1
    k_enc_w, k_enc_b, k_ode_w, k_ode_b, k_dec_w, k_dec_b = jax.random.split(key, 6)

    def uni(k, shape, fan_in):
        bound = 1.0 / math.sqrt(fan_in)
        return jax.random.uniform(k, shape, jnp.float32, -bound, bound)

    # encoder Linear(in_feature, hidden): stored as (in, hidden)
    w_enc = uni(k_enc_w, (in_feature, hidden), in_feature)
    b_enc = uni(k_enc_b, (1, hidden), in_feature)

    # LinearT Linear(hidden+1, hidden), stored as (in, out) = (hidden+1, hidden).
    # Row 0 multiplies the t-feature; rows 1: multiply x.
    w_full = uni(k_ode_w, (hidden + 1, hidden), hidden + 1)
    b_ode = uni(k_ode_b, (1, hidden), hidden + 1)
    wt_ode = w_full[0:1, :]        # (1, hidden)
    wx_ode = w_full[1:, :]         # (hidden, hidden)

    # decoder Linear(hidden, out_feature): stored as (hidden, out)
    w_dec = uni(k_dec_w, (hidden, out_feature), hidden)
    b_dec = uni(k_dec_b, (1, out_feature), hidden)

    return {
        "w_enc": w_enc, "b_enc": b_enc,
        "wt_ode": wt_ode, "wx_ode": wx_ode, "b_ode": b_ode,
        "w_dec": w_dec, "b_dec": b_dec,
        "n_ode_layers": L,
    }


def reference_forward(x, params):
    """Pure-JAX reference mirroring the PyTorch forward (for sanity check)."""
    h0 = _gelu(x @ params["w_enc"] + params["b_enc"])
    L = params["n_ode_layers"]

    def f(t, y):
        for _ in range(L):
            y = _gelu(y @ params["wx_ode"] + t * params["wt_ode"]
                      + params["b_ode"])
        return y

    dt = 1.0
    k1 = f(0.0, h0)
    k2 = f(dt / 3.0, h0 + dt * k1 / 3.0)
    k3 = f(2.0 * dt / 3.0, h0 + dt * (k2 - k1 / 3.0))
    k4 = f(dt, h0 + dt * (k1 - k2 + k3))
    h1 = h0 + (k1 + 3.0 * (k2 + k3) + k4) * (dt * 0.125)
    return h1 @ params["w_dec"] + params["b_dec"]


if __name__ == "__main__":
    # hyper-params consistent with PlasmaModel(x_width, y_width, h_param)
    x_width, y_width = 16, 4
    h_param = {"architecture": "NeuralODE", "nlayer": 3, "hidden": 32}
    batch = 8

    key = jax.random.PRNGKey(0)
    k_param, k_x, k_x2 = jax.random.split(key, 3)
    params = init_params(k_param, x_width, h_param["hidden"], y_width,
                         h_param["nlayer"])

    # small demo batch
    x = jax.random.normal(k_x, (batch, x_width), jnp.float32)
    out = jax.block_until_ready(plasma_forward(x, params))
    ref = reference_forward(x, params)
    assert out.shape == (batch, y_width)
    assert jnp.allclose(out, ref, atol=1e-4, rtol=1e-4), "mismatch vs reference (batch=8)"

    # larger batch exercising the tiled grid + padding path
    big = 1030
    x2 = jax.random.normal(k_x2, (big, x_width), jnp.float32)
    out2 = jax.block_until_ready(plasma_forward(x2, params))
    ref2 = reference_forward(x2, params)
    assert out2.shape == (big, y_width)
    assert jnp.allclose(out2, ref2, atol=1e-4, rtol=1e-4), "mismatch vs reference (batch=1030)"

    print("KERNEL_OK")
</pallas_src>

<mosaic_0001>
module attributes {stable_mosaic.version = 11 : i64} {
  func.func @plasma_kernel(%arg0: i32, %arg1: memref<8x16xf32, #tpu.memory_space<vmem>>, %arg2: memref<16x32xf32, #tpu.memory_space<vmem>>, %arg3: memref<1x32xf32, #tpu.memory_space<vmem>>, %arg4: memref<1x32xf32, #tpu.memory_space<vmem>>, %arg5: memref<32x32xf32, #tpu.memory_space<vmem>>, %arg6: memref<1x32xf32, #tpu.memory_space<vmem>>, %arg7: memref<4x32xf32, #tpu.memory_space<vmem>>, %arg8: memref<4x1xf32, #tpu.memory_space<vmem>>, %arg9: memref<4x8xf32, #tpu.memory_space<vmem>>) attributes {dimension_semantics = [#tpu.dimension_semantics<parallel>], iteration_bounds = array<i64: 1>, scalar_prefetch = 0 : i64, scratch_operands = 0 : i64, tpu.core_type = #tpu.core_type<tc>, window_params = [{transform_indices = @transform_0, window_bounds = array<i64: 8, 16>}, {pipeline_mode = #tpu.pipeline_mode<synchronous>, transform_indices = @transform_1, window_bounds = array<i64: 16, 32>}, {pipeline_mode = #tpu.pipeline_mode<synchronous>, transform_indices = @transform_2, window_bounds = array<i64: 1, 32>}, {pipeline_mode = #tpu.pipeline_mode<synchronous>, transform_indices = @transform_3, window_bounds = array<i64: 1, 32>}, {pipeline_mode = #tpu.pipeline_mode<synchronous>, transform_indices = @transform_4, window_bounds = array<i64: 32, 32>}, {pipeline_mode = #tpu.pipeline_mode<synchronous>, transform_indices = @transform_5, window_bounds = array<i64: 1, 32>}, {pipeline_mode = #tpu.pipeline_mode<synchronous>, transform_indices = @transform_6, window_bounds = array<i64: 4, 32>}, {pipeline_mode = #tpu.pipeline_mode<synchronous>, transform_indices = @transform_7, window_bounds = array<i64: 4, 1>}, {transform_indices = @transform_8, window_bounds = array<i64: 4, 8>}]} {
    %c0 = arith.constant 0 : index
    %c0_0 = arith.constant 0 : index
    %0 = vector.load %arg1[%c0, %c0_0] : memref<8x16xf32, #tpu.memory_space<vmem>>, vector<8x16xf32>
    %c0_1 = arith.constant 0 : index
    %c0_2 = arith.constant 0 : index
    %1 = vector.load %arg2[%c0_1, %c0_2] : memref<16x32xf32, #tpu.memory_space<vmem>>, vector<16x32xf32>
    %cst = arith.constant dense<0.000000e+00> : vector<8x32xf32>
    %2 = tpu.matmul %0, %1, %cst {dimension_numbers = #tpu.dot_dimension_numbers<[1], [0], [0], [1], [0, 0, 1, 1], [], []>} : vector<8x16xf32>, vector<16x32xf32>, vector<8x32xf32> -> vector<8x32xf32>
    %c0_3 = arith.constant 0 : index
    %c0_4 = arith.constant 0 : index
    %3 = vector.load %arg3[%c0_3, %c0_4] : memref<1x32xf32, #tpu.memory_space<vmem>>, vector<1x32xf32>
    %4 = vector.broadcast %3 : vector<1x32xf32> to vector<8x32xf32>
    %5 = arith.addf %2, %4 : vector<8x32xf32>
    %cst_5 = arith.constant 5.000000e-01 : f32
    %6 = vector.broadcast %cst_5 : f32 to vector<8x32xf32>
    %7 = arith.mulf %6, %5 : vector<8x32xf32>
    %cst_6 = arith.constant 0.707106769 : f32
    %8 = vector.broadcast %cst_6 : f32 to vector<8x32xf32>
    %9 = arith.mulf %5, %8 : vector<8x32xf32>
    %10 = math.erf %9 : vector<8x32xf32>
    %cst_7 = arith.constant 1.000000e+00 : f32
    %11 = vector.broadcast %cst_7 : f32 to vector<8x32xf32>
    %12 = arith.addf %11, %10 : vector<8x32xf32>
    %13 = arith.mulf %7, %12 : vector<8x32xf32>
    %c0_8 = arith.constant 0 : index
    %c0_9 = arith.constant 0 : index
    %14 = vector.load %arg5[%c0_8, %c0_9] : memref<32x32xf32, #tpu.memory_space<vmem>>, vector<32x32xf32>
    %c0_10 = arith.constant 0 : index
    %c0_11 = arith.constant 0 : index
    %15 = vector.load %arg4[%c0_10, %c0_11] : memref<1x32xf32, #tpu.memory_space<vmem>>, vector<1x32xf32>
    %c0_12 = arith.constant 0 : index
    %c0_13 = arith.constant 0 : index
    %16 = vector.load %arg6[%c0_12, %c0_13] : memref<1x32xf32, #tpu.memory_space<vmem>>, vector<1x32xf32>
    %cst_14 = arith.constant 0.333333343 : f32
    %17 = vector.broadcast %cst_14 : f32 to vector<1x32xf32>
    %18 = arith.mulf %15, %17 : vector<1x32xf32>
    %19 = arith.addf %18, %16 : vector<1x32xf32>
    %cst_15 = arith.constant 0.666666686 : f32
    %20 = vector.broadcast %cst_15 : f32 to vector<1x32xf32>
    %21 = arith.mulf %15, %20 : vector<1x32xf32>
    %22 = arith.addf %21, %16 : vector<1x32xf32>
    %23 = arith.addf %15, %16 : vector<1x32xf32>
    %cst_16 = arith.constant dense<0.000000e+00> : vector<8x32xf32>
    %24 = tpu.matmul %13, %14, %cst_16 {dimension_numbers = #tpu.dot_dimension_numbers<[1], [0], [0], [1], [0, 0, 1, 1], [], []>} : vector<8x32xf32>, vector<32x32xf32>, vector<8x32xf32> -> vector<8x32xf32>
    %25 = vector.broadcast %16 : vector<1x32xf32> to vector<8x32xf32>
    %26 = arith.addf %24, %25 : vector<8x32xf32>
    %cst_17 = arith.constant 5.000000e-01 : f32
    %27 = vector.broadcast %cst_17 : f32 to vector<8x32xf32>
    %28 = arith.mulf %27, %26 : vector<8x32xf32>
    %cst_18 = arith.constant 0.707106769 : f32
    %29 = vector.broadcast %cst_18 : f32 to vector<8x32xf32>
    %30 = arith.mulf %26, %29 : vector<8x32xf32>
    %31 = math.erf %30 : vector<8x32xf32>
    %cst_19 = arith.constant 1.000000e+00 : f32
    %32 = vector.broadcast %cst_19 : f32 to vector<8x32xf32>
    %33 = arith.addf %32, %31 : vector<8x32xf32>
    %34 = arith.mulf %28, %33 : vector<8x32xf32>
    %cst_20 = arith.constant dense<0.000000e+00> : vector<8x32xf32>
    %35 = tpu.matmul %34, %14, %cst_20 {dimension_numbers = #tpu.dot_dimension_numbers<[1], [0], [0], [1], [0, 0, 1, 1], [], []>} : vector<8x32xf32>, vector<32x32xf32>, vector<8x32xf32> -> vector<8x32xf32>
    %36 = vector.broadcast %16 : vector<1x32xf32> to vector<8x32xf32>
    %37 = arith.addf %35, %36 : vector<8x32xf32>
    %cst_21 = arith.constant 5.000000e-01 : f32
    %38 = vector.broadcast %cst_21 : f32 to vector<8x32xf32>
    %39 = arith.mulf %38, %37 : vector<8x32xf32>
    %cst_22 = arith.constant 0.707106769 : f32
    %40 = vector.broadcast %cst_22 : f32 to vector<8x32xf32>
    %41 = arith.mulf %37, %40 : vector<8x32xf32>
    %42 = math.erf %41 : vector<8x32xf32>
    %cst_23 = arith.constant 1.000000e+00 : f32
    %43 = vector.broadcast %cst_23 : f32 to vector<8x32xf32>
    %44 = arith.addf %43, %42 : vector<8x32xf32>
    %45 = arith.mulf %39, %44 : vector<8x32xf32>
    %cst_24 = arith.constant 0.333333343 : f32
    %46 = vector.broadcast %cst_24 : f32 to vector<8x32xf32>
    %47 = arith.mulf %45, %46 : vector<8x32xf32>
    %48 = arith.addf %13, %47 : vector<8x32xf32>
    %cst_25 = arith.constant dense<0.000000e+00> : vector<8x32xf32>
    %49 = tpu.matmul %48, %14, %cst_25 {dimension_numbers = #tpu.dot_dimension_numbers<[1], [0], [0], [1], [0, 0, 1, 1], [], []>} : vector<8x32xf32>, vector<32x32xf32>, vector<8x32xf32> -> vector<8x32xf32>
    %50 = vector.broadcast %19 : vector<1x32xf32> to vector<8x32xf32>
    %51 = arith.addf %49, %50 : vector<8x32xf32>
    %cst_26 = arith.constant 5.000000e-01 : f32
    %52 = vector.broadcast %cst_26 : f32 to vector<8x32xf32>
    %53 = arith.mulf %52, %51 : vector<8x32xf32>
    %cst_27 = arith.constant 0.707106769 : f32
    %54 = vector.broadcast %cst_27 : f32 to vector<8x32xf32>
    %55 = arith.mulf %51, %54 : vector<8x32xf32>
    %56 = math.erf %55 : vector<8x32xf32>
    %cst_28 = arith.constant 1.000000e+00 : f32
    %57 = vector.broadcast %cst_28 : f32 to vector<8x32xf32>
    %58 = arith.addf %57, %56 : vector<8x32xf32>
    %59 = arith.mulf %53, %58 : vector<8x32xf32>
    %cst_29 = arith.constant dense<0.000000e+00> : vector<8x32xf32>
    %60 = tpu.matmul %59, %14, %cst_29 {dimension_numbers = #tpu.dot_dimension_numbers<[1], [0], [0], [1], [0, 0, 1, 1], [], []>} : vector<8x32xf32>, vector<32x32xf32>, vector<8x32xf32> -> vector<8x32xf32>
    %61 = vector.broadcast %19 : vector<1x32xf32> to vector<8x32xf32>
    %62 = arith.addf %60, %61 : vector<8x32xf32>
    %cst_30 = arith.constant 5.000000e-01 : f32
    %63 = vector.broadcast %cst_30 : f32 to vector<8x32xf32>
    %64 = arith.mulf %63, %62 : vector<8x32xf32>
    %cst_31 = arith.constant 0.707106769 : f32
    %65 = vector.broadcast %cst_31 : f32 to vector<8x32xf32>
    %66 = arith.mulf %62, %65 : vector<8x32xf32>
    %67 = math.erf %66 : vector<8x32xf32>
    %cst_32 = arith.constant 1.000000e+00 : f32
    %68 = vector.broadcast %cst_32 : f32 to vector<8x32xf32>
    %69 = arith.addf %68, %67 : vector<8x32xf32>
    %70 = arith.mulf %64, %69 : vector<8x32xf32>
    %cst_33 = arith.constant 0.333333343 : f32
    %71 = vector.broadcast %cst_33 : f32 to vector<8x32xf32>
    %72 = arith.mulf %45, %71 : vector<8x32xf32>
    %73 = arith.subf %70, %72 : vector<8x32xf32>
    %74 = arith.addf %13, %73 : vector<8x32xf32>
    %cst_34 = arith.constant dense<0.000000e+00> : vector<8x32xf32>
    %75 = tpu.matmul %74, %14, %cst_34 {dimension_numbers = #tpu.dot_dimension_numbers<[1], [0], [0], [1], [0, 0, 1, 1], [], []>} : vector<8x32xf32>, vector<32x32xf32>, vector<8x32xf32> -> vector<8x32xf32>
    %76 = vector.broadcast %22 : vector<1x32xf32> to vector<8x32xf32>
    %77 = arith.addf %75, %76 : vector<8x32xf32>
    %cst_35 = arith.constant 5.000000e-01 : f32
    %78 = vector.broadcast %cst_35 : f32 to vector<8x32xf32>
    %79 = arith.mulf %78, %77 : vector<8x32xf32>
    %cst_36 = arith.constant 0.707106769 : f32
    %80 = vector.broadcast %cst_36 : f32 to vector<8x32xf32>
    %81 = arith.mulf %77, %80 : vector<8x32xf32>
    %82 = math.erf %81 : vector<8x32xf32>
    %cst_37 = arith.constant 1.000000e+00 : f32
    %83 = vector.broadcast %cst_37 : f32 to vector<8x32xf32>
    %84 = arith.addf %83, %82 : vector<8x32xf32>
    %85 = arith.mulf %79, %84 : vector<8x32xf32>
    %cst_38 = arith.constant dense<0.000000e+00> : vector<8x32xf32>
    %86 = tpu.matmul %85, %14, %cst_38 {dimension_numbers = #tpu.dot_dimension_numbers<[1], [0], [0], [1], [0, 0, 1, 1], [], []>} : vector<8x32xf32>, vector<32x32xf32>, vector<8x32xf32> -> vector<8x32xf32>
    %87 = vector.broadcast %22 : vector<1x32xf32> to vector<8x32xf32>
    %88 = arith.addf %86, %87 : vector<8x32xf32>
    %cst_39 = arith.constant 5.000000e-01 : f32
    %89 = vector.broadcast %cst_39 : f32 to vector<8x32xf32>
    %90 = arith.mulf %89, %88 : vector<8x32xf32>
    %cst_40 = arith.constant 0.707106769 : f32
    %91 = vector.broadcast %cst_40 : f32 to vector<8x32xf32>
    %92 = arith.mulf %88, %91 : vector<8x32xf32>
    %93 = math.erf %92 : vector<8x32xf32>
    %cst_41 = arith.constant 1.000000e+00 : f32
    %94 = vector.broadcast %cst_41 : f32 to vector<8x32xf32>
    %95 = arith.addf %94, %93 : vector<8x32xf32>
    %96 = arith.mulf %90, %95 : vector<8x32xf32>
    %97 = arith.subf %45, %70 : vector<8x32xf32>
    %98 = arith.addf %97, %96 : vector<8x32xf32>
    %99 = arith.addf %13, %98 : vector<8x32xf32>
    %cst_42 = arith.constant dense<0.000000e+00> : vector<8x32xf32>
    %100 = tpu.matmul %99, %14, %cst_42 {dimension_numbers = #tpu.dot_dimension_numbers<[1], [0], [0], [1], [0, 0, 1, 1], [], []>} : vector<8x32xf32>, vector<32x32xf32>, vector<8x32xf32> -> vector<8x32xf32>
    %101 = vector.broadcast %23 : vector<1x32xf32> to vector<8x32xf32>
    %102 = arith.addf %100, %101 : vector<8x32xf32>
    %cst_43 = arith.constant 5.000000e-01 : f32
    %103 = vector.broadcast %cst_43 : f32 to vector<8x32xf32>
    %104 = arith.mulf %103, %102 : vector<8x32xf32>
    %cst_44 = arith.constant 0.707106769 : f32
    %105 = vector.broadcast %cst_44 : f32 to vector<8x32xf32>
    %106 = arith.mulf %102, %105 : vector<8x32xf32>
    %107 = math.erf %106 : vector<8x32xf32>
    %cst_45 = arith.constant 1.000000e+00 : f32
    %108 = vector.broadcast %cst_45 : f32 to vector<8x32xf32>
    %109 = arith.addf %108, %107 : vector<8x32xf32>
    %110 = arith.mulf %104, %109 : vector<8x32xf32>
    %cst_46 = arith.constant dense<0.000000e+00> : vector<8x32xf32>
    %111 = tpu.matmul %110, %14, %cst_46 {dimension_numbers = #tpu.dot_dimension_numbers<[1], [0], [0], [1], [0, 0, 1, 1], [], []>} : vector<8x32xf32>, vector<32x32xf32>, vector<8x32xf32> -> vector<8x32xf32>
    %112 = vector.broadcast %23 : vector<1x32xf32> to vector<8x32xf32>
    %113 = arith.addf %111, %112 : vector<8x32xf32>
    %cst_47 = arith.constant 5.000000e-01 : f32
    %114 = vector.broadcast %cst_47 : f32 to vector<8x32xf32>
    %115 = arith.mulf %114, %113 : vector<8x32xf32>
    %cst_48 = arith.constant 0.707106769 : f32
    %116 = vector.broadcast %cst_48 : f32 to vector<8x32xf32>
    %117 = arith.mulf %113, %116 : vector<8x32xf32>
    %118 = math.erf %117 : vector<8x32xf32>
    %cst_49 = arith.constant 1.000000e+00 : f32
    %119 = vector.broadcast %cst_49 : f32 to vector<8x32xf32>
    %120 = arith.addf %119, %118 : vector<8x32xf32>
    %121 = arith.mulf %115, %120 : vector<8x32xf32>
    %122 = arith.addf %70, %96 : vector<8x32xf32>
    %cst_50 = arith.constant 3.000000e+00 : f32
    %123 = vector.broadcast %cst_50 : f32 to vector<8x32xf32>
    %124 = arith.mulf %123, %122 : vector<8x32xf32>
    %125 = arith.addf %45, %124 : vector<8x32xf32>
    %126 = arith.addf %125, %121 : vector<8x32xf32>
    %cst_51 = arith.constant 1.250000e-01 : f32
    %127 = vector.broadcast %cst_51 : f32 to vector<8x32xf32>
    %128 = arith.mulf %126, %127 : vector<8x32xf32>
    %129 = arith.addf %13, %128 : vector<8x32xf32>
    %c0_52 = arith.constant 0 : index
    %c0_53 = arith.constant 0 : index
    %130 = vector.load %arg7[%c0_52, %c0_53] : memref<4x32xf32, #tpu.memory_space<vmem>>, vector<4x32xf32>
    %cst_54 = arith.constant dense<0.000000e+00> : vector<4x8xf32>
    %131 = tpu.matmul %130, %129, %cst_54 {dimension_numbers = #tpu.dot_dimension_numbers<[1], [1], [0], [0], [0, 0, 1, 0], [], []>} : vector<4x32xf32>, vector<8x32xf32>, vector<4x8xf32> -> vector<4x8xf32>
    %c0_55 = arith.constant 0 : index
    %c0_56 = arith.constant 0 : index
    %132 = vector.load %arg8[%c0_55, %c0_56] : memref<4x1xf32, #tpu.memory_space<vmem>>, vector<4x1xf32>
    %133 = vector.broadcast %132 : vector<4x1xf32> to vector<4x8xf32>
    %134 = arith.addf %131, %133 : vector<4x8xf32>
    %c0_57 = arith.constant 0 : index
    %c0_58 = arith.constant 0 : index
    %135 = vector.load %arg9[%c0_57, %c0_58] : memref<4x8xf32, #tpu.memory_space<vmem>>, vector<4x8xf32>
    tpu.vector_store %arg9[%c0_57, %c0_58], %134 {strides = array<i32>} : memref<4x8xf32, #tpu.memory_space<vmem>>, vector<4x8xf32>,
    return
  }
  func.func @transform_0(%arg0: i32) -> (i32, i32) {
    %c0_i32 = arith.constant 0 : i32
    %c0_i32_0 = arith.constant 0 : i32
    return %arg0, %c0_i32 : i32, i32
  }
  func.func @transform_1(%arg0: i32) -> (i32, i32) {
    %c0_i32 = arith.constant 0 : i32
    %c0_i32_0 = arith.constant 0 : i32
    %c0_i32_1 = arith.constant 0 : i32
    return %c0_i32, %c0_i32_0 : i32, i32
  }
  func.func @transform_2(%arg0: i32) -> (i32, i32) {
    %c0_i32 = arith.constant 0 : i32
    %c0_i32_0 = arith.constant 0 : i32
    %c0_i32_1 = arith.constant 0 : i32
    return %c0_i32, %c0_i32_0 : i32, i32
  }
  func.func @transform_3(%arg0: i32) -> (i32, i32) {
    %c0_i32 = arith.constant 0 : i32
    %c0_i32_0 = arith.constant 0 : i32
    %c0_i32_1 = arith.constant 0 : i32
    return %c0_i32, %c0_i32_0 : i32, i32
  }
  func.func @transform_4(%arg0: i32) -> (i32, i32) {
    %c0_i32 = arith.constant 0 : i32
    %c0_i32_0 = arith.constant 0 : i32
    %c0_i32_1 = arith.constant 0 : i32
    return %c0_i32, %c0_i32_0 : i32, i32
  }
  func.func @transform_5(%arg0: i32) -> (i32, i32) {
    %c0_i32 = arith.constant 0 : i32
    %c0_i32_0 = arith.constant 0 : i32
    %c0_i32_1 = arith.constant 0 : i32
    return %c0_i32, %c0_i32_0 : i32, i32
  }
  func.func @transform_6(%arg0: i32) -> (i32, i32) {
    %c0_i32 = arith.constant 0 : i32
    %c0_i32_0 = arith.constant 0 : i32
    %c0_i32_1 = arith.constant 0 : i32
    return %c0_i32, %c0_i32_0 : i32, i32
  }
  func.func @transform_7(%arg0: i32) -> (i32, i32) {
    %c0_i32 = arith.constant 0 : i32
    %c0_i32_0 = arith.constant 0 : i32
    %c0_i32_1 = arith.constant 0 : i32
    return %c0_i32, %c0_i32_0 : i32, i32
  }
  func.func @transform_8(%arg0: i32) -> (i32, i32) {
    %c0_i32 = arith.constant 0 : i32
    %c0_i32_0 = arith.constant 0 : i32
    return %c0_i32, %arg0 : i32, i32
  }
}

</mosaic_0001>

<llo_original>
// kernel: tpu_custom_call.1
$region0: #{tpu_custom_call.1}
  #allocation0 [shape = 'u32[]', space=smem, size = 0x4, offset = 0x4, fixed_abs, tag = 'smem constant byte address 0x4 - core index']
  #allocation1 [shape = 'u32[144,128]{1,0:T(1,128)}', space=vmem, size = 0x12000, scoped, tag = 'internal scratch']
  %s0 = inlined_call_operand.hbm [shape: f32[8,16], index: 0, kind: input, shape index: {}]
  %s1 = inlined_call_operand.hbm [shape: f32[16,32], index: 1, kind: input, shape index: {}]
  %s2 = inlined_call_operand.vmem [shape: f32[1,32], index: 2, kind: input, shape index: {}]
  %s3 = inlined_call_operand.vmem [shape: f32[1,32], index: 3, kind: input, shape index: {}]
  %s4 = inlined_call_operand.hbm [shape: f32[32,32], index: 4, kind: input, shape index: {}]
  %s5 = inlined_call_operand.vmem [shape: f32[1,32], index: 5, kind: input, shape index: {}]
  %s6 = inlined_call_operand.vmem [shape: f32[4,32], index: 6, kind: input, shape index: {}]
  %s7 = inlined_call_operand.vmem [shape: f32[4,1], index: 7, kind: input, shape index: {}]
  %s8 = inlined_call_operand.hbm [shape: f32[4,8], index: 8, kind: output, shape index: {}]
  %s9 = sld [smem:[#allocation0]]
  $region54: #{tpu_custom_call.1} parent=0
    _
  %s11 = ssub.s32 1, %s9
  %s12 = scalar_select 0, %s11, %s9
  $region1: #{tpu_custom_call.1} parent=0
    #allocation2 [shape = 'u8[4096]{0}', space=vmem, size = 0x1000, scoped, tag = 'input window, operand 0, single buffered']
    #allocation3 [shape = 's32[1]{0}', space=sflag, size = 0x4, scoped, tag = 'scoped memory for tpu_custom_call.1']
    #allocation4 [shape = 's32[1]{0}', space=sflag, size = 0x4, scoped, tag = 'scoped memory for tpu_custom_call.1']
    #allocation5 [shape = 'u8[8192]{0}', space=vmem, size = 0x2000, scoped, tag = 'input window, operand 1, single buffered']
    #allocation6 [shape = 's32[1]{0}', space=sflag, size = 0x4, scoped, tag = 'scoped memory for tpu_custom_call.1']
    #allocation7 [shape = 'u8[16384]{0}', space=vmem, size = 0x4000, scoped, tag = 'input window, operand 4, single buffered']
    #allocation8 [shape = 'u8[2048]{0}', space=vmem, size = 0x800, scoped, tag = 'output window, operand 0, single buffered']
    %13 = vsyncpa [#allocation3], 0
    %14 = vsyncpa [#allocation6], 0
    %15 = vsyncpa [#allocation4], 0
    // Predicated region
    $region2: #{tpu_custom_call.1} parent=1 // pred_check
      _
    $region3: #{tpu_custom_call.1} parent=1 // pred_check_branch
      %17 = sbr.rel (0) target = $region5
    $region4: #{tpu_custom_call.1} parent=1 // pred_region
      %s19 = ssub.s32 128, 128
      %20 = vsyncadd [#allocation3], %s19
      %s22 = sshll.u32 [#allocation2], 4
      %s23 = int_to_ptr.vmem [resolvable:$true] %s22
      %25 = dma.hbm_to_vmem [thread:$0]  %s0, 128, %s23, [#allocation3]
    $region5: #{tpu_custom_call.1} parent=1 // pred_fallthru
      _
    // Predicated region
    $region6: #{tpu_custom_call.1} parent=1 // pred_check
      _
    $region7: #{tpu_custom_call.1} parent=1 // pred_check_branch
      %27 = sbr.rel (0) target = $region9
    $region8: #{tpu_custom_call.1} parent=1 // pred_region
      %s29 = ssub.s32 256, 256
      %30 = vsyncadd [#allocation6], %s29
      %s31 = sshll.u32 [#allocation5], 4
      %s32 = int_to_ptr.vmem [resolvable:$true] %s31
      %37 = dma.hbm_to_vmem [thread:$0]  %s1, 256, %s32, [#allocation6], 128, 128, 8
    $region9: #{tpu_custom_call.1} parent=1 // pred_fallthru
      _
    // Predicated region
    $region10: #{tpu_custom_call.1} parent=1 // pred_check
      _
    $region11: #{tpu_custom_call.1} parent=1 // pred_check_branch
      %39 = sbr.rel (0) target = $region13
    $region12: #{tpu_custom_call.1} parent=1 // pred_region
      _
    $region13: #{tpu_custom_call.1} parent=1 // pred_fallthru
      _
    // Predicated region
    $region14: #{tpu_custom_call.1} parent=1 // pred_check
      _
    $region15: #{tpu_custom_call.1} parent=1 // pred_check_branch
      %41 = sbr.rel (0) target = $region17
    $region16: #{tpu_custom_call.1} parent=1 // pred_region
      _
    $region17: #{tpu_custom_call.1} parent=1 // pred_fallthru
      _
    // Predicated region
    $region18: #{tpu_custom_call.1} parent=1 // pred_check
      _
    $region19: #{tpu_custom_call.1} parent=1 // pred_check_branch
      %43 = sbr.rel (0) target = $region21
    $region20: #{tpu_custom_call.1} parent=1 // pred_region
      %s45 = ssub.s32 512, 512
      %46 = vsyncadd [#allocation6], %s45
      %s47 = sshll.u32 [#allocation7], 4
      %s48 = int_to_ptr.vmem [resolvable:$true] %s47
      %53 = dma.hbm_to_vmem [thread:$0]  %s4, 512, %s48, [#allocation6], 128, 128, 8
    $region21: #{tpu_custom_call.1} parent=1 // pred_fallthru
      _
    // Predicated region
    $region22: #{tpu_custom_call.1} parent=1 // pred_check
      _
    $region23: #{tpu_custom_call.1} parent=1 // pred_check_branch
      %55 = sbr.rel (0) target = $region25
    $region24: #{tpu_custom_call.1} parent=1 // pred_region
      _
    $region25: #{tpu_custom_call.1} parent=1 // pred_fallthru
      _
    // Predicated region
    $region26: #{tpu_custom_call.1} parent=1 // pred_check
      _
    $region27: #{tpu_custom_call.1} parent=1 // pred_check_branch
      %57 = sbr.rel (0) target = $region29
    $region28: #{tpu_custom_call.1} parent=1 // pred_region
      _
    $region29: #{tpu_custom_call.1} parent=1 // pred_fallthru
      _
    // Predicated region
    $region30: #{tpu_custom_call.1} parent=1 // pred_check
      _
    $region31: #{tpu_custom_call.1} parent=1 // pred_check_branch
      %59 = sbr.rel (0) target = $region33
    $region32: #{tpu_custom_call.1} parent=1 // pred_region
      _
    $region33: #{tpu_custom_call.1} parent=1 // pred_fallthru
      _
    // Predicated region
    $region34: #{tpu_custom_call.1} parent=1 // pred_check
      _
    $region35: #{tpu_custom_call.1} parent=1 // pred_check_branch
      %61 = sbr.rel (0) target = $region37
    $region36: #{tpu_custom_call.1} parent=1 // pred_region
      %62 = dma.done [#allocation3], 128
    $region37: #{tpu_custom_call.1} parent=1 // pred_fallthru
      _
    // Predicated region
    $region38: #{tpu_custom_call.1} parent=1 // pred_check
      _
    $region39: #{tpu_custom_call.1} parent=1 // pred_check_branch
      %64 = sbr.rel (0) target = $region41
    $region40: #{tpu_custom_call.1} parent=1 // pred_region
      %65 = dma.done [#allocation6], 256
    $region41: #{tpu_custom_call.1} parent=1 // pred_fallthru
      _
    // Predicated region
    $region42: #{tpu_custom_call.1} parent=1 // pred_check
      _
    $region43: #{tpu_custom_call.1} parent=1 // pred_check_branch
      %67 = sbr.rel (0) target = $region45
    $region44: #{tpu_custom_call.1} parent=1 // pred_region
      %68 = dma.done [#allocation6], 512
    $region45: #{tpu_custom_call.1} parent=1 // pred_fallthru
      _
    %v69 = vld [vmem:[#allocation2] sm:$0xff]
    %v70 = vld [vmem:[#allocation5] sm:$0xff]
    %v71 = vld [vmem:[#allocation5 + $0x8] sm:$0xff]
    %v72 = vld [vmem:[%s2] sm:$0x1]
    %v74 = vlaneseq
    %v75 = vshrl.u32 %v74, 7
    %v76 = vsub.s32 0, %v75
    %v77 = vrot.slane %v72, %v76
    %vm79 = vcmask 130048
    %v81 = vsel %vm79, %v69, 0
    %83 = vmatprep.subr.mxu0 0.0
    %84 = vmatpush1.msra.mxu0 %v70
    %85 = vmatprep.subr.mxu0 0.0
    %86 = vmatpush1.msra.mxu0 %v71
    %87 = vmatprep.subr.mxu0 0.0
    %88 = vmatpush1.msra.mxu0 0.0
    %89 = vmatprep.subr.mxu0 0.0
    %90 = vmatpush1.msra.mxu0 0.0
    %91 = vmatprep.subr.mxu0 0.0
    %92 = vmatpush1.msra.mxu0 0.0
    %93 = vmatprep.subr.mxu0 0.0
    %94 = vmatpush1.msra.mxu0 0.0
    %95 = vmatprep.subr.mxu0 0.0
    %96 = vmatpush1.msra.mxu0 0.0
    %97 = vmatprep.subr.mxu0 0.0
    %98 = vmatpush1.msra.mxu0 0.0
    %99 = vmatprep.subr.mxu0 0.0
    %100 = vmatpush1.msra.mxu0 0.0
    %101 = vmatprep.subr.mxu0 0.0
    %102 = vmatpush1.msra.mxu0 0.0
    %103 = vmatprep.subr.mxu0 0.0
    %104 = vmatpush1.msra.mxu0 0.0
    %105 = vmatprep.subr.mxu0 0.0
    %106 = vmatpush1.msra.mxu0 0.0
    %107 = vmatprep.subr.mxu0 0.0
    %108 = vmatpush1.msra.mxu0 0.0
    %109 = vmatprep.subr.mxu0 0.0
    %110 = vmatpush1.msra.mxu0 0.0
    %111 = vmatprep.subr.mxu0 0.0
    %112 = vmatpush1.msra.mxu0 0.0
    %113 = vmatprep.subr.mxu0 0.0
    %114 = vmatpush1.msra.mxu0 0.0
    %115 = vmatprep.subr.mxu0 0.0
    %116 = vmatpush1.msra.mxu0 0.0
    %117 = vmatprep.subr.mxu0 0.0
    %118 = vmatpush1.msra.mxu0 0.0
    %119 = vmatprep.subr.mxu0 0.0
    %120 = vmatpush1.msra.mxu0 0.0
    %121 = vmatprep.subr.mxu0 0.0
    %122 = vmatpush1.msra.mxu0 0.0
    %123 = vmatprep.subr.mxu0 0.0
    %124 = vmatpush1.msra.mxu0 0.0
    %125 = vmatprep.subr.mxu0 0.0
    %126 = vmatpush1.msra.mxu0 0.0
    %127 = vmatprep.subr.mxu0 0.0
    %128 = vmatpush1.msra.mxu0 0.0
    %129 = vmatprep.subr.mxu0 0.0
    %130 = vmatpush1.msra.mxu0 0.0
    %131 = vmatprep.subr.mxu0 0.0
    %132 = vmatpush1.msra.mxu0 0.0
    %133 = vmatprep.subr.mxu0 0.0
    %134 = vmatpush1.msra.mxu0 0.0
    %135 = vmatprep.subr.mxu0 0.0
    %136 = vmatpush1.msra.mxu0 0.0
    %137 = vmatprep.subr.mxu0 0.0
    %138 = vmatpush1.msra.mxu0 0.0
    %139 = vmatprep.subr.mxu0 0.0
    %140 = vmatpush1.msra.mxu0 0.0
    %141 = vmatprep.subr.mxu0 0.0
    %142 = vmatpush1.msra.mxu0 0.0
    %143 = vmatprep.subr.mxu0 0.0
    %144 = vmatpush1.msra.mxu0 0.0
    %145 = vmatprep.subr.mxu0 0.0
    %146 = vmatpush1.msra.mxu0 0.0
    %147 = vmatprep.mubr.f32.mxu0 0.0
    %148 = vmatmul.mubr.f32.gmra.mrb[0].mxu0 %v81
    %v149 = vpop.f32.mrb[0].mxu0
    %v150 = vadd.f32 %v77, %v149
    %v151 = vpop.f32.mrb[0].mxu0
    %152 = vdwg.mxu0
    %v153 = vmul.f32 %v150, 0.5
    %v154 = vmul.f32 %v150, 0.70710677
    %v155 = verf.f32.pop %v154
    %v156 = vadd.f32 %v155, 1.0
    %v157 = vmul.f32 %v153, %v156
    %v158 = vld [vmem:[#allocation7] sm:$0xff]
    %v159 = vld [vmem:[#allocation7 + $0x8] sm:$0xff]
    %v160 = vld [vmem:[#allocation7 + $0x10] sm:$0xff]
    %v161 = vld [vmem:[#allocation7 + $0x18] sm:$0xff]
    %v162 = vld [vmem:[%s3] sm:$0x1]
    %v163 = vld [vmem:[%s5] sm:$0x1]
    %v164 = vmul.f32 %v162, 0.33333334
    %v165 = vadd.f32 %v164, %v163
    %v166 = vmul.f32 %v162, 0.6666667
    %v167 = vadd.f32 %v166, %v163
    %v168 = vadd.f32 %v162, %v163
    %v170 = vlaneseq
    %v171 = vshrl.u32 %v170, 7
    %v172 = vsub.s32 0, %v171
    %v173 = vrot.slane %v163, %v172
    %vm175 = vcmask 261120
    %v177 = vsel %vm175, %v157, 0
    %179 = vmatprep.subr.mxu0 0.0
    %180 = vmatpush1.msra.mxu0 %v158
    %181 = vmatprep.subr.mxu0 0.0
    %182 = vmatpush1.msra.mxu0 %v159
    %183 = vmatprep.subr.mxu0 0.0
    %184 = vmatpush1.msra.mxu0 %v160
    %185 = vmatprep.subr.mxu0 0.0
    %186 = vmatpush1.msra.mxu0 %v161
    %187 = vmatprep.subr.mxu0 0.0
    %188 = vmatpush1.msra.mxu0 0.0
    %189 = vmatprep.subr.mxu0 0.0
    %190 = vmatpush1.msra.mxu0 0.0
    %191 = vmatprep.subr.mxu0 0.0
    %192 = vmatpush1.msra.mxu0 0.0
    %193 = vmatprep.subr.mxu0 0.0
    %194 = vmatpush1.msra.mxu0 0.0
    %195 = vmatprep.subr.mxu0 0.0
    %196 = vmatpush1.msra.mxu0 0.0
    %197 = vmatprep.subr.mxu0 0.0
    %198 = vmatpush1.msra.mxu0 0.0
    %199 = vmatprep.subr.mxu0 0.0
    %200 = vmatpush1.msra.mxu0 0.0
    %201 = vmatprep.subr.mxu0 0.0
    %202 = vmatpush1.msra.mxu0 0.0
    %203 = vmatprep.subr.mxu0 0.0
    %204 = vmatpush1.msra.mxu0 0.0
    %205 = vmatprep.subr.mxu0 0.0
    %206 = vmatpush1.msra.mxu0 0.0
    %207 = vmatprep.subr.mxu0 0.0
    %208 = vmatpush1.msra.mxu0 0.0
    %209 = vmatprep.subr.mxu0 0.0
    %210 = vmatpush1.msra.mxu0 0.0
    %211 = vmatprep.subr.mxu0 0.0
    %212 = vmatpush1.msra.mxu0 0.0
    %213 = vmatprep.subr.mxu0 0.0
    %214 = vmatpush1.msra.mxu0 0.0
    %215 = vmatprep.subr.mxu0 0.0
    %216 = vmatpush1.msra.mxu0 0.0
    %217 = vmatprep.subr.mxu0 0.0
    %218 = vmatpush1.msra.mxu0 0.0
    %219 = vmatprep.subr.mxu0 0.0
    %220 = vmatpush1.msra.mxu0 0.0
    %221 = vmatprep.subr.mxu0 0.0
    %222 = vmatpush1.msra.mxu0 0.0
    %223 = vmatprep.subr.mxu0 0.0
    %224 = vmatpush1.msra.mxu0 0.0
    %225 = vmatprep.subr.mxu0 0.0
    %226 = vmatpush1.msra.mxu0 0.0
    %227 = vmatprep.subr.mxu0 0.0
    %228 = vmatpush1.msra.mxu0 0.0
    %229 = vmatprep.subr.mxu0 0.0
    %230 = vmatpush1.msra.mxu0 0.0
    %231 = vmatprep.subr.mxu0 0.0
    %232 = vmatpush1.msra.mxu0 0.0
    %233 = vmatprep.subr.mxu0 0.0
    %234 = vmatpush1.msra.mxu0 0.0
    %235 = vmatprep.subr.mxu0 0.0
    %236 = vmatpush1.msra.mxu0 0.0
    %237 = vmatprep.subr.mxu0 0.0
    %238 = vmatpush1.msra.mxu0 0.0
    %239 = vmatprep.subr.mxu0 0.0
    %240 = vmatpush1.msra.mxu0 0.0
    %241 = vmatprep.subr.mxu0 0.0
    %242 = vmatpush1.msra.mxu0 0.0
    %243 = vmatprep.mubr.f32.mxu0 0.0
    %244 = vmatmul.mubr.f32.gmra.mrb[0].mxu0 %v177
    %v245 = vpop.f32.mrb[0].mxu0
    %v246 = vadd.f32 %v173, %v245
    %v247 = vpop.f32.mrb[0].mxu0
    %248 = vdwg.mxu0
    %v249 = vmul.f32 %v246, 0.5
    %v250 = vmul.f32 %v246, 0.70710677
    %v251 = verf.f32.pop %v250
    %v252 = vadd.f32 %v251, 1.0
    %v253 = vmul.f32 %v249, %v252
    %v255 = vsel %vm175, %v253, 0
    %257 = vmatprep.subr.mxu0 0.0
    %258 = vmatpush1.msra.mxu0 %v158
    %259 = vmatprep.subr.mxu0 0.0
    %260 = vmatpush1.msra.mxu0 %v159
    %261 = vmatprep.subr.mxu0 0.0
    %262 = vmatpush1.msra.mxu0 %v160
    %263 = vmatprep.subr.mxu0 0.0
    %264 = vmatpush1.msra.mxu0 %v161
    %265 = vmatprep.subr.mxu0 0.0
    %266 = vmatpush1.msra.mxu0 0.0
    %267 = vmatprep.subr.mxu0 0.0
    %268 = vmatpush1.msra.mxu0 0.0
    %269 = vmatprep.subr.mxu0 0.0
    %270 = vmatpush1.msra.mxu0 0.0
    %271 = vmatprep.subr.mxu0 0.0
    %272 = vmatpush1.msra.mxu0 0.0
    %273 = vmatprep.subr.mxu0 0.0
    %274 = vmatpush1.msra.mxu0 0.0
    %275 = vmatprep.subr.mxu0 0.0
    %276 = vmatpush1.msra.mxu0 0.0
    %277 = vmatprep.subr.mxu0 0.0
    %278 = vmatpush1.msra.mxu0 0.0
    %279 = vmatprep.subr.mxu0 0.0
    %280 = vmatpush1.msra.mxu0 0.0
    %281 = vmatprep.subr.mxu0 0.0
    %282 = vmatpush1.msra.mxu0 0.0
    %283 = vmatprep.subr.mxu0 0.0
    %284 = vmatpush1.msra.mxu0 0.0
    %285 = vmatprep.subr.mxu0 0.0
    %286 = vmatpush1.msra.mxu0 0.0
    %287 = vmatprep.subr.mxu0 0.0
    %288 = vmatpush1.msra.mxu0 0.0
    %289 = vmatprep.subr.mxu0 0.0
    %290 = vmatpush1.msra.mxu0 0.0
    %291 = vmatprep.subr.mxu0 0.0
    %292 = vmatpush1.msra.mxu0 0.0
    %293 = vmatprep.subr.mxu0 0.0
    %294 = vmatpush1.msra.mxu0 0.0
    %295 = vmatprep.subr.mxu0 0.0
    %296 = vmatpush1.msra.mxu0 0.0
    %297 = vmatprep.subr.mxu0 0.0
    %298 = vmatpush1.msra.mxu0 0.0
    %299 = vmatprep.subr.mxu0 0.0
    %300 = vmatpush1.msra.mxu0 0.0
    %301 = vmatprep.subr.mxu0 0.0
    %302 = vmatpush1.msra.mxu0 0.0
    %303 = vmatprep.subr.mxu0 0.0
    %304 = vmatpush1.msra.mxu0 0.0
    %305 = vmatprep.subr.mxu0 0.0
    %306 = vmatpush1.msra.mxu0 0.0
    %307 = vmatprep.subr.mxu0 0.0
    %308 = vmatpush1.msra.mxu0 0.0
    %309 = vmatprep.subr.mxu0 0.0
    %310 = vmatpush1.msra.mxu0 0.0
    %311 = vmatprep.subr.mxu0 0.0
    %312 = vmatpush1.msra.mxu0 0.0
    %313 = vmatprep.subr.mxu0 0.0
    %314 = vmatpush1.msra.mxu0 0.0
    %315 = vmatprep.subr.mxu0 0.0
    %316 = vmatpush1.msra.mxu0 0.0
    %317 = vmatprep.subr.mxu0 0.0
    %318 = vmatpush1.msra.mxu0 0.0
    %319 = vmatprep.subr.mxu0 0.0
    %320 = vmatpush1.msra.mxu0 0.0
    %321 = vmatprep.mubr.f32.mxu0 0.0
    %322 = vmatmul.mubr.f32.gmra.mrb[0].mxu0 %v255
    %v323 = vpop.f32.mrb[0].mxu0
    %v324 = vadd.f32 %v173, %v323
    %v325 = vpop.f32.mrb[0].mxu0
    %326 = vdwg.mxu0
    %v327 = vmul.f32 %v324, 0.5
    %v328 = vmul.f32 %v324, 0.70710677
    %v329 = verf.f32.pop %v328
    %v330 = vadd.f32 %v329, 1.0
    %v331 = vmul.f32 %v327, %v330
    %v332 = vmul.f32 %v331, 0.33333334
    %v333 = vadd.f32 %v157, %v332
    %v335 = vlaneseq
    %v336 = vshrl.u32 %v335, 7
    %v337 = vsub.s32 0, %v336
    %v338 = vrot.slane %v165, %v337
    %v341 = vsel %vm175, %v333, 0
    %343 = vmatprep.subr.mxu0 0.0
    %344 = vmatpush1.msra.mxu0 %v158
    %345 = vmatprep.subr.mxu0 0.0
    %346 = vmatpush1.msra.mxu0 %v159
    %347 = vmatprep.subr.mxu0 0.0
    %348 = vmatpush1.msra.mxu0 %v160
    %349 = vmatprep.subr.mxu0 0.0
    %350 = vmatpush1.msra.mxu0 %v161
    %351 = vmatprep.subr.mxu0 0.0
    %352 = vmatpush1.msra.mxu0 0.0
    %353 = vmatprep.subr.mxu0 0.0
    %354 = vmatpush1.msra.mxu0 0.0
    %355 = vmatprep.subr.mxu0 0.0
    %356 = vmatpush1.msra.mxu0 0.0
    %357 = vmatprep.subr.mxu0 0.0
    %358 = vmatpush1.msra.mxu0 0.0
    %359 = vmatprep.subr.mxu0 0.0
    %360 = vmatpush1.msra.mxu0 0.0
    %361 = vmatprep.subr.mxu0 0.0
    %362 = vmatpush1.msra.mxu0 0.0
    %363 = vmatprep.subr.mxu0 0.0
    %364 = vmatpush1.msra.mxu0 0.0
    %365 = vmatprep.subr.mxu0 0.0
    %366 = vmatpush1.msra.mxu0 0.0
    %367 = vmatprep.subr.mxu0 0.0
    %368 = vmatpush1.msra.mxu0 0.0
    %369 = vmatprep.subr.mxu0 0.0
    %370 = vmatpush1.msra.mxu0 0.0
    %371 = vmatprep.subr.mxu0 0.0
    %372 = vmatpush1.msra.mxu0 0.0
    %373 = vmatprep.subr.mxu0 0.0
    %374 = vmatpush1.msra.mxu0 0.0
    %375 = vmatprep.subr.mxu0 0.0
    %376 = vmatpush1.msra.mxu0 0.0
    %377 = vmatprep.subr.mxu0 0.0
    %378 = vmatpush1.msra.mxu0 0.0
    %379 = vmatprep.subr.mxu0 0.0
    %380 = vmatpush1.msra.mxu0 0.0
    %381 = vmatprep.subr.mxu0 0.0
    %382 = vmatpush1.msra.mxu0 0.0
    %383 = vmatprep.subr.mxu0 0.0
    %384 = vmatpush1.msra.mxu0 0.0
    %385 = vmatprep.subr.mxu0 0.0
    %386 = vmatpush1.msra.mxu0 0.0
    %387 = vmatprep.subr.mxu0 0.0
    %388 = vmatpush1.msra.mxu0 0.0
    %389 = vmatprep.subr.mxu0 0.0
    %390 = vmatpush1.msra.mxu0 0.0
    %391 = vmatprep.subr.mxu0 0.0
    %392 = vmatpush1.msra.mxu0 0.0
    %393 = vmatprep.subr.mxu0 0.0
    %394 = vmatpush1.msra.mxu0 0.0
    %395 = vmatprep.subr.mxu0 0.0
    %396 = vmatpush1.msra.mxu0 0.0
    %397 = vmatprep.subr.mxu0 0.0
    %398 = vmatpush1.msra.mxu0 0.0
    %399 = vmatprep.subr.mxu0 0.0
    %400 = vmatpush1.msra.mxu0 0.0
    %401 = vmatprep.subr.mxu0 0.0
    %402 = vmatpush1.msra.mxu0 0.0
    %403 = vmatprep.subr.mxu0 0.0
    %404 = vmatpush1.msra.mxu0 0.0
    %405 = vmatprep.subr.mxu0 0.0
    %406 = vmatpush1.msra.mxu0 0.0
    %407 = vmatprep.mubr.f32.mxu0 0.0
    %408 = vmatmul.mubr.f32.gmra.mrb[0].mxu0 %v341
    %v409 = vpop.f32.mrb[0].mxu0
    %v410 = vadd.f32 %v338, %v409
    %v411 = vpop.f32.mrb[0].mxu0
    %412 = vdwg.mxu0
    %v413 = vmul.f32 %v410, 0.5
    %v414 = vmul.f32 %v410, 0.70710677
    %v415 = verf.f32.pop %v414
    %v416 = vadd.f32 %v415, 1.0
    %v417 = vmul.f32 %v413, %v416
    %v419 = vsel %vm175, %v417, 0
    %421 = vmatprep.subr.mxu0 0.0
    %422 = vmatpush1.msra.mxu0 %v158
    %423 = vmatprep.subr.mxu0 0.0
    %424 = vmatpush1.msra.mxu0 %v159
    %425 = vmatprep.subr.mxu0 0.0
    %426 = vmatpush1.msra.mxu0 %v160
    %427 = vmatprep.subr.mxu0 0.0
    %428 = vmatpush1.msra.mxu0 %v161
    %429 = vmatprep.subr.mxu0 0.0
    %430 = vmatpush1.msra.mxu0 0.0
    %431 = vmatprep.subr.mxu0 0.0
    %432 = vmatpush1.msra.mxu0 0.0
    %433 = vmatprep.subr.mxu0 0.0
    %434 = vmatpush1.msra.mxu0 0.0
    %435 = vmatprep.subr.mxu0 0.0
    %436 = vmatpush1.msra.mxu0 0.0
    %437 = vmatprep.subr.mxu0 0.0
    %438 = vmatpush1.msra.mxu0 0.0
    %439 = vmatprep.subr.mxu0 0.0
    %440 = vmatpush1.msra.mxu0 0.0
    %441 = vmatprep.subr.mxu0 0.0
    %442 = vmatpush1.msra.mxu0 0.0
    %443 = vmatprep.subr.mxu0 0.0
    %444 = vmatpush1.msra.mxu0 0.0
    %445 = vmatprep.subr.mxu0 0.0
    %446 = vmatpush1.msra.mxu0 0.0
    %447 = vmatprep.subr.mxu0 0.0
    %448 = vmatpush1.msra.mxu0 0.0
    %449 = vmatprep.subr.mxu0 0.0
    %450 = vmatpush1.msra.mxu0 0.0
    %451 = vmatprep.subr.mxu0 0.0
    %452 = vmatpush1.msra.mxu0 0.0
    %453 = vmatprep.subr.mxu0 0.0
    %454 = vmatpush1.msra.mxu0 0.0
    %455 = vmatprep.subr.mxu0 0.0
    %456 = vmatpush1.msra.mxu0 0.0
    %457 = vmatprep.subr.mxu0 0.0
    %458 = vmatpush1.msra.mxu0 0.0
    %459 = vmatprep.subr.mxu0 0.0
    %460 = vmatpush1.msra.mxu0 0.0
    %461 = vmatprep.subr.mxu0 0.0
    %462 = vmatpush1.msra.mxu0 0.0
    %463 = vmatprep.subr.mxu0 0.0
    %464 = vmatpush1.msra.mxu0 0.0
    %465 = vmatprep.subr.mxu0 0.0
    %466 = vmatpush1.msra.mxu0 0.0
    %467 = vmatprep.subr.mxu0 0.0
    %468 = vmatpush1.msra.mxu0 0.0
    %469 = vmatprep.subr.mxu0 0.0
    %470 = vmatpush1.msra.mxu0 0.0
    %471 = vmatprep.subr.mxu0 0.0
    %472 = vmatpush1.msra.mxu0 0.0
    %473 = vmatprep.subr.mxu0 0.0
    %474 = vmatpush1.msra.mxu0 0.0
    %475 = vmatprep.subr.mxu0 0.0
    %476 = vmatpush1.msra.mxu0 0.0
    %477 = vmatprep.subr.mxu0 0.0
    %478 = vmatpush1.msra.mxu0 0.0
    %479 = vmatprep.subr.mxu0 0.0
    %480 = vmatpush1.msra.mxu0 0.0
    %481 = vmatprep.subr.mxu0 0.0
    %482 = vmatpush1.msra.mxu0 0.0
    %483 = vmatprep.subr.mxu0 0.0
    %484 = vmatpush1.msra.mxu0 0.0
    %485 = vmatprep.mubr.f32.mxu0 0.0
    %486 = vmatmul.mubr.f32.gmra.mrb[0].mxu0 %v419
    %v487 = vpop.f32.mrb[0].mxu0
    %v488 = vadd.f32 %v338, %v487
    %v489 = vpop.f32.mrb[0].mxu0
    %490 = vdwg.mxu0
    %v491 = vmul.f32 %v488, 0.5
    %v492 = vmul.f32 %v488, 0.70710677
    %v493 = verf.f32.pop %v492
    %v494 = vadd.f32 %v493, 1.0
    %v495 = vmul.f32 %v491, %v494
    %v496 = vsub.f32 %v495, %v332
    %v497 = vadd.f32 %v157, %v496
    %v499 = vlaneseq
    %v500 = vshrl.u32 %v499, 7
    %v501 = vsub.s32 0, %v500
    %v502 = vrot.slane %v167, %v501
    %v505 = vsel %vm175, %v497, 0
    %507 = vmatprep.subr.mxu0 0.0
    %508 = vmatpush1.msra.mxu0 %v158
    %509 = vmatprep.subr.mxu0 0.0
    %510 = vmatpush1.msra.mxu0 %v159
    %511 = vmatprep.subr.mxu0 0.0
    %512 = vmatpush1.msra.mxu0 %v160
    %513 = vmatprep.subr.mxu0 0.0
    %514 = vmatpush1.msra.mxu0 %v161
    %515 = vmatprep.subr.mxu0 0.0
    %516 = vmatpush1.msra.mxu0 0.0
    %517 = vmatprep.subr.mxu0 0.0
    %518 = vmatpush1.msra.mxu0 0.0
    %519 = vmatprep.subr.mxu0 0.0
    %520 = vmatpush1.msra.mxu0 0.0
    %521 = vmatprep.subr.mxu0 0.0
    %522 = vmatpush1.msra.mxu0 0.0
    %523 = vmatprep.subr.mxu0 0.0
    %524 = vmatpush1.msra.mxu0 0.0
    %525 = vmatprep.subr.mxu0 0.0
    %526 = vmatpush1.msra.mxu0 0.0
    %527 = vmatprep.subr.mxu0 0.0
    %528 = vmatpush1.msra.mxu0 0.0
    %529 = vmatprep.subr.mxu0 0.0
    %530 = vmatpush1.msra.mxu0 0.0
    %531 = vmatprep.subr.mxu0 0.0
    %532 = vmatpush1.msra.mxu0 0.0
    %533 = vmatprep.subr.mxu0 0.0
    %534 = vmatpush1.msra.mxu0 0.0
    %535 = vmatprep.subr.mxu0 0.0
    %536 = vmatpush1.msra.mxu0 0.0
    %537 = vmatprep.subr.mxu0 0.0
    %538 = vmatpush1.msra.mxu0 0.0
    %539 = vmatprep.subr.mxu0 0.0
    %540 = vmatpush1.msra.mxu0 0.0
    %541 = vmatprep.subr.mxu0 0.0
    %542 = vmatpush1.msra.mxu0 0.0
    %543 = vmatprep.subr.mxu0 0.0
    %544 = vmatpush1.msra.mxu0 0.0
    %545 = vmatprep.subr.mxu0 0.0
    %546 = vmatpush1.msra.mxu0 0.0
    %547 = vmatprep.subr.mxu0 0.0
    %548 = vmatpush1.msra.mxu0 0.0
    %549 = vmatprep.subr.mxu0 0.0
    %550 = vmatpush1.msra.mxu0 0.0
    %551 = vmatprep.subr.mxu0 0.0
    %552 = vmatpush1.msra.mxu0 0.0
    %553 = vmatprep.subr.mxu0 0.0
    %554 = vmatpush1.msra.mxu0 0.0
    %555 = vmatprep.subr.mxu0 0.0
    %556 = vmatpush1.msra.mxu0 0.0
    %557 = vmatprep.subr.mxu0 0.0
    %558 = vmatpush1.msra.mxu0 0.0
    %559 = vmatprep.subr.mxu0 0.0
    %560 = vmatpush1.msra.mxu0 0.0
    %561 = vmatprep.subr.mxu0 0.0
    %562 = vmatpush1.msra.mxu0 0.0
    %563 = vmatprep.subr.mxu0 0.0
    %564 = vmatpush1.msra.mxu0 0.0
    %565 = vmatprep.subr.mxu0 0.0
    %566 = vmatpush1.msra.mxu0 0.0
    %567 = vmatprep.subr.mxu0 0.0
    %568 = vmatpush1.msra.mxu0 0.0
    %569 = vmatprep.subr.mxu0 0.0
    %570 = vmatpush1.msra.mxu0 0.0
    %571 = vmatprep.mubr.f32.mxu0 0.0
    %572 = vmatmul.mubr.f32.gmra.mrb[0].mxu0 %v505
    %v573 = vpop.f32.mrb[0].mxu0
    %v574 = vadd.f32 %v502, %v573
    %v575 = vpop.f32.mrb[0].mxu0
    %576 = vdwg.mxu0
    %v577 = vmul.f32 %v574, 0.5
    %v578 = vmul.f32 %v574, 0.70710677
    %v579 = verf.f32.pop %v578
    %v580 = vadd.f32 %v579, 1.0
    %v581 = vmul.f32 %v577, %v580
    %v583 = vsel %vm175, %v581, 0
    %585 = vmatprep.subr.mxu0 0.0
    %586 = vmatpush1.msra.mxu0 %v158
    %587 = vmatprep.subr.mxu0 0.0
    %588 = vmatpush1.msra.mxu0 %v159
    %589 = vmatprep.subr.mxu0 0.0
    %590 = vmatpush1.msra.mxu0 %v160
    %591 = vmatprep.subr.mxu0 0.0
    %592 = vmatpush1.msra.mxu0 %v161
    %593 = vmatprep.subr.mxu0 0.0
    %594 = vmatpush1.msra.mxu0 0.0
    %595 = vmatprep.subr.mxu0 0.0
    %596 = vmatpush1.msra.mxu0 0.0
    %597 = vmatprep.subr.mxu0 0.0
    %598 = vmatpush1.msra.mxu0 0.0
    %599 = vmatprep.subr.mxu0 0.0
    %600 = vmatpush1.msra.mxu0 0.0
    %601 = vmatprep.subr.mxu0 0.0
    %602 = vmatpush1.msra.mxu0 0.0
    %603 = vmatprep.subr.mxu0 0.0
    %604 = vmatpush1.msra.mxu0 0.0
    %605 = vmatprep.subr.mxu0 0.0
    %606 = vmatpush1.msra.mxu0 0.0
    %607 = vmatprep.subr.mxu0 0.0
    %608 = vmatpush1.msra.mxu0 0.0
    %609 = vmatprep.subr.mxu0 0.0
    %610 = vmatpush1.msra.mxu0 0.0
    %611 = vmatprep.subr.mxu0 0.0
    %612 = vmatpush1.msra.mxu0 0.0
    %613 = vmatprep.subr.mxu0 0.0
    %614 = vmatpush1.msra.mxu0 0.0
    %615 = vmatprep.subr.mxu0 0.0
    %616 = vmatpush1.msra.mxu0 0.0
    %617 = vmatprep.subr.mxu0 0.0
    %618 = vmatpush1.msra.mxu0 0.0
    %619 = vmatprep.subr.mxu0 0.0
    %620 = vmatpush1.msra.mxu0 0.0
    %621 = vmatprep.subr.mxu0 0.0
    %622 = vmatpush1.msra.mxu0 0.0
    %623 = vmatprep.subr.mxu0 0.0
    %624 = vmatpush1.msra.mxu0 0.0
    %625 = vmatprep.subr.mxu0 0.0
    %626 = vmatpush1.msra.mxu0 0.0
    %627 = vmatprep.subr.mxu0 0.0
    %628 = vmatpush1.msra.mxu0 0.0
    %629 = vmatprep.subr.mxu0 0.0
    %630 = vmatpush1.msra.mxu0 0.0
    %631 = vmatprep.subr.mxu0 0.0
    %632 = vmatpush1.msra.mxu0 0.0
    %633 = vmatprep.subr.mxu0 0.0
    %634 = vmatpush1.msra.mxu0 0.0
    %635 = vmatprep.subr.mxu0 0.0
    %636 = vmatpush1.msra.mxu0 0.0
    %637 = vmatprep.subr.mxu0 0.0
    %638 = vmatpush1.msra.mxu0 0.0
    %639 = vmatprep.subr.mxu0 0.0
    %640 = vmatpush1.msra.mxu0 0.0
    %641 = vmatprep.subr.mxu0 0.0
    %642 = vmatpush1.msra.mxu0 0.0
    %643 = vmatprep.subr.mxu0 0.0
    %644 = vmatpush1.msra.mxu0 0.0
    %645 = vmatprep.subr.mxu0 0.0
    %646 = vmatpush1.msra.mxu0 0.0
    %647 = vmatprep.subr.mxu0 0.0
    %648 = vmatpush1.msra.mxu0 0.0
    %649 = vmatprep.mubr.f32.mxu0 0.0
    %650 = vmatmul.mubr.f32.gmra.mrb[0].mxu0 %v583
    %v651 = vpop.f32.mrb[0].mxu0
    %v652 = vadd.f32 %v502, %v651
    %v653 = vpop.f32.mrb[0].mxu0
    %654 = vdwg.mxu0
    %v655 = vmul.f32 %v652, 0.5
    %v656 = vmul.f32 %v652, 0.70710677
    %v657 = verf.f32.pop %v656
    %v658 = vadd.f32 %v657, 1.0
    %v659 = vmul.f32 %v655, %v658
    %v660 = vsub.f32 %v331, %v495
    %v661 = vadd.f32 %v660, %v659
    %v662 = vadd.f32 %v157, %v661
    %v664 = vlaneseq
    %v665 = vshrl.u32 %v664, 7
    %v666 = vsub.s32 0, %v665
    %v667 = vrot.slane %v168, %v666
    %v670 = vsel %vm175, %v662, 0
    %672 = vmatprep.subr.mxu0 0.0
    %673 = vmatpush1.msra.mxu0 %v158
    %674 = vmatprep.subr.mxu0 0.0
    %675 = vmatpush1.msra.mxu0 %v159
    %676 = vmatprep.subr.mxu0 0.0
    %677 = vmatpush1.msra.mxu0 %v160
    %678 = vmatprep.subr.mxu0 0.0
    %679 = vmatpush1.msra.mxu0 %v161
    %680 = vmatprep.subr.mxu0 0.0
    %681 = vmatpush1.msra.mxu0 0.0
    %682 = vmatprep.subr.mxu0 0.0
    %683 = vmatpush1.msra.mxu0 0.0
    %684 = vmatprep.subr.mxu0 0.0
    %685 = vmatpush1.msra.mxu0 0.0
    %686 = vmatprep.subr.mxu0 0.0
    %687 = vmatpush1.msra.mxu0 0.0
    %688 = vmatprep.subr.mxu0 0.0
    %689 = vmatpush1.msra.mxu0 0.0
    %690 = vmatprep.subr.mxu0 0.0
    %691 = vmatpush1.msra.mxu0 0.0
    %692 = vmatprep.subr.mxu0 0.0
    %693 = vmatpush1.msra.mxu0 0.0
    %694 = vmatprep.subr.mxu0 0.0
    %695 = vmatpush1.msra.mxu0 0.0
    %696 = vmatprep.subr.mxu0 0.0
    %697 = vmatpush1.msra.mxu0 0.0
    %698 = vmatprep.subr.mxu0 0.0
    %699 = vmatpush1.msra.mxu0 0.0
    %700 = vmatprep.subr.mxu0 0.0
    %701 = vmatpush1.msra.mxu0 0.0
    %702 = vmatprep.subr.mxu0 0.0
    %703 = vmatpush1.msra.mxu0 0.0
    %704 = vmatprep.subr.mxu0 0.0
    %705 = vmatpush1.msra.mxu0 0.0
    %706 = vmatprep.subr.mxu0 0.0
    %707 = vmatpush1.msra.mxu0 0.0
    %708 = vmatprep.subr.mxu0 0.0
    %709 = vmatpush1.msra.mxu0 0.0
    %710 = vmatprep.subr.mxu0 0.0
    %711 = vmatpush1.msra.mxu0 0.0
    %712 = vmatprep.subr.mxu0 0.0
    %713 = vmatpush1.msra.mxu0 0.0
    %714 = vmatprep.subr.mxu0 0.0
    %715 = vmatpush1.msra.mxu0 0.0
    %716 = vmatprep.subr.mxu0 0.0
    %717 = vmatpush1.msra.mxu0 0.0
    %718 = vmatprep.subr.mxu0 0.0
    %719 = vmatpush1.msra.mxu0 0.0
    %720 = vmatprep.subr.mxu0 0.0
    %721 = vmatpush1.msra.mxu0 0.0
    %722 = vmatprep.subr.mxu0 0.0
    %723 = vmatpush1.msra.mxu0 0.0
    %724 = vmatprep.subr.mxu0 0.0
    %725 = vmatpush1.msra.mxu0 0.0
    %726 = vmatprep.subr.mxu0 0.0
    %727 = vmatpush1.msra.mxu0 0.0
    %728 = vmatprep.subr.mxu0 0.0
    %729 = vmatpush1.msra.mxu0 0.0
    %730 = vmatprep.subr.mxu0 0.0
    %731 = vmatpush1.msra.mxu0 0.0
    %732 = vmatprep.subr.mxu0 0.0
    %733 = vmatpush1.msra.mxu0 0.0
    %734 = vmatprep.subr.mxu0 0.0
    %735 = vmatpush1.msra.mxu0 0.0
    %736 = vmatprep.mubr.f32.mxu0 0.0
    %737 = vmatmul.mubr.f32.gmra.mrb[0].mxu0 %v670
    %v738 = vpop.f32.mrb[0].mxu0
    %v739 = vadd.f32 %v667, %v738
    %v740 = vpop.f32.mrb[0].mxu0
    %741 = vdwg.mxu0
    %v742 = vmul.f32 %v739, 0.5
    %v743 = vmul.f32 %v739, 0.70710677
    %v744 = verf.f32.pop %v743
    %v745 = vadd.f32 %v744, 1.0
    %v746 = vmul.f32 %v742, %v745
    %v748 = vsel %vm175, %v746, 0
    %750 = vmatprep.subr.mxu0 0.0
    %751 = vmatpush1.msra.mxu0 %v158
    %752 = vmatprep.subr.mxu0 0.0
    %753 = vmatpush1.msra.mxu0 %v159
    %754 = vmatprep.subr.mxu0 0.0
    %755 = vmatpush1.msra.mxu0 %v160
    %756 = vmatprep.subr.mxu0 0.0
    %757 = vmatpush1.msra.mxu0 %v161
    %758 = vmatprep.subr.mxu0 0.0
    %759 = vmatpush1.msra.mxu0 0.0
    %760 = vmatprep.subr.mxu0 0.0
    %761 = vmatpush1.msra.mxu0 0.0
    %762 = vmatprep.subr.mxu0 0.0
    %763 = vmatpush1.msra.mxu0 0.0
    %764 = vmatprep.subr.mxu0 0.0
    %765 = vmatpush1.msra.mxu0 0.0
    %766 = vmatprep.subr.mxu0 0.0
    %767 = vmatpush1.msra.mxu0 0.0
    %768 = vmatprep.subr.mxu0 0.0
    %769 = vmatpush1.msra.mxu0 0.0
    %770 = vmatprep.subr.mxu0 0.0
    %771 = vmatpush1.msra.mxu0 0.0
    %772 = vmatprep.subr.mxu0 0.0
    %773 = vmatpush1.msra.mxu0 0.0
    %774 = vmatprep.subr.mxu0 0.0
    %775 = vmatpush1.msra.mxu0 0.0
    %776 = vmatprep.subr.mxu0 0.0
    %777 = vmatpush1.msra.mxu0 0.0
    %778 = vmatprep.subr.mxu0 0.0
    %779 = vmatpush1.msra.mxu0 0.0
    %780 = vmatprep.subr.mxu0 0.0
    %781 = vmatpush1.msra.mxu0 0.0
    %782 = vmatprep.subr.mxu0 0.0
    %783 = vmatpush1.msra.mxu0 0.0
    %784 = vmatprep.subr.mxu0 0.0
    %785 = vmatpush1.msra.mxu0 0.0
    %786 = vmatprep.subr.mxu0 0.0
    %787 = vmatpush1.msra.mxu0 0.0
    %788 = vmatprep.subr.mxu0 0.0
    %789 = vmatpush1.msra.mxu0 0.0
    %790 = vmatprep.subr.mxu0 0.0
    %791 = vmatpush1.msra.mxu0 0.0
    %792 = vmatprep.subr.mxu0 0.0
    %793 = vmatpush1.msra.mxu0 0.0
    %794 = vmatprep.subr.mxu0 0.0
    %795 = vmatpush1.msra.mxu0 0.0
    %796 = vmatprep.subr.mxu0 0.0
    %797 = vmatpush1.msra.mxu0 0.0
    %798 = vmatprep.subr.mxu0 0.0
    %799 = vmatpush1.msra.mxu0 0.0
    %800 = vmatprep.subr.mxu0 0.0
    %801 = vmatpush1.msra.mxu0 0.0
    %802 = vmatprep.subr.mxu0 0.0
    %803 = vmatpush1.msra.mxu0 0.0
    %804 = vmatprep.subr.mxu0 0.0
    %805 = vmatpush1.msra.mxu0 0.0
    %806 = vmatprep.subr.mxu0 0.0
    %807 = vmatpush1.msra.mxu0 0.0
    %808 = vmatprep.subr.mxu0 0.0
    %809 = vmatpush1.msra.mxu0 0.0
    %810 = vmatprep.subr.mxu0 0.0
    %811 = vmatpush1.msra.mxu0 0.0
    %812 = vmatprep.subr.mxu0 0.0
    %813 = vmatpush1.msra.mxu0 0.0
    %814 = vmatprep.mubr.f32.mxu0 0.0
    %815 = vmatmul.mubr.f32.gmra.mrb[0].mxu0 %v748
    %v816 = vpop.f32.mrb[0].mxu0
    %v817 = vadd.f32 %v667, %v816
    %v818 = vpop.f32.mrb[0].mxu0
    %819 = vdwg.mxu0
    %v820 = vmul.f32 %v817, 0.5
    %v821 = vmul.f32 %v817, 0.70710677
    %v822 = verf.f32.pop %v821
    %v823 = vadd.f32 %v822, 1.0
    %v824 = vmul.f32 %v820, %v823
    %v825 = vadd.f32 %v495, %v659
    %v826 = vmul.f32 %v825, 3.0
    %v827 = vadd.f32 %v331, %v826
    %v828 = vadd.f32 %v827, %v824
    %v829 = vmul.f32 %v828, 0.125
    %v830 = vadd.f32 %v157, %v829
    %v831 = vld [vmem:[%s6] sm:$0xf]
    %v832 = vld [vmem:[%s7] sm:$0xf]
    %834 = vset.pattern.permute.xlu0 0
    %835 = vperm.xlu0 %834, %v832
    %v836 = vpop.permute.xlu0 %835
    %v839 = vsel %vm175, %v831, 0
    %v842 = vsel %vm175, %v830, 0
    %844 = vmatprep.subr.mxu0 0.0
    %845 = vmatpush1.xpose.msra.mxu0 %v842
    %846 = vmatprep.subr.mxu0 0.0
    %847 = vmatpush1.xpose.msra.mxu0 0.0
    %848 = vmatprep.subr.mxu0 0.0
    %849 = vmatpush1.xpose.msra.mxu0 0.0
    %850 = vmatprep.subr.mxu0 0.0
    %851 = vmatpush1.xpose.msra.mxu0 0.0
    %852 = vmatprep.subr.mxu0 0.0
    %853 = vmatpush1.xpose.msra.mxu0 0.0
    %854 = vmatprep.subr.mxu0 0.0
    %855 = vmatpush1.xpose.msra.mxu0 0.0
    %856 = vmatprep.subr.mxu0 0.0
    %857 = vmatpush1.xpose.msra.mxu0 0.0
    %858 = vmatprep.subr.mxu0 0.0
    %859 = vmatpush1.xpose.msra.mxu0 0.0
    %860 = vmatprep.subr.mxu0 0.0
    %861 = vmatpush1.xpose.msra.mxu0 0.0
    %862 = vmatprep.subr.mxu0 0.0
    %863 = vmatpush1.xpose.msra.mxu0 0.0
    %864 = vmatprep.subr.mxu0 0.0
    %865 = vmatpush1.xpose.msra.mxu0 0.0
    %866 = vmatprep.subr.mxu0 0.0
    %867 = vmatpush1.xpose.msra.mxu0 0.0
    %868 = vmatprep.subr.mxu0 0.0
    %869 = vmatpush1.xpose.msra.mxu0 0.0
    %870 = vmatprep.subr.mxu0 0.0
    %871 = vmatpush1.xpose.msra.mxu0 0.0
    %872 = vmatprep.subr.mxu0 0.0
    %873 = vmatpush1.xpose.msra.mxu0 0.0
    %874 = vmatprep.subr.mxu0 0.0
    %875 = vmatpush1.xpose.msra.mxu0 0.0
    %876 = vmatprep.subr.mxu0 0.0
    %877 = vmatpush1.xpose.msra.mxu0 0.0
    %878 = vmatprep.subr.mxu0 0.0
    %879 = vmatpush1.xpose.msra.mxu0 0.0
    %880 = vmatprep.subr.mxu0 0.0
    %881 = vmatpush1.xpose.msra.mxu0 0.0
    %882 = vmatprep.subr.mxu0 0.0
    %883 = vmatpush1.xpose.msra.mxu0 0.0
    %884 = vmatprep.subr.mxu0 0.0
    %885 = vmatpush1.xpose.msra.mxu0 0.0
    %886 = vmatprep.subr.mxu0 0.0
    %887 = vmatpush1.xpose.msra.mxu0 0.0
    %888 = vmatprep.subr.mxu0 0.0
    %889 = vmatpush1.xpose.msra.mxu0 0.0
    %890 = vmatprep.subr.mxu0 0.0
    %891 = vmatpush1.xpose.msra.mxu0 0.0
    %892 = vmatprep.subr.mxu0 0.0
    %893 = vmatpush1.xpose.msra.mxu0 0.0
    %894 = vmatprep.subr.mxu0 0.0
    %895 = vmatpush1.xpose.msra.mxu0 0.0
    %896 = vmatprep.subr.mxu0 0.0
    %897 = vmatpush1.xpose.msra.mxu0 0.0
    %898 = vmatprep.subr.mxu0 0.0
    %899 = vmatpush1.xpose.msra.mxu0 0.0
    %900 = vmatprep.subr.mxu0 0.0
    %901 = vmatpush1.xpose.msra.mxu0 0.0
    %902 = vmatprep.subr.mxu0 0.0
    %903 = vmatpush1.xpose.msra.mxu0 0.0
    %904 = vmatprep.subr.mxu0 0.0
    %905 = vmatpush1.xpose.msra.mxu0 0.0
    %906 = vmatprep.subr.mxu0 0.0
    %907 = vmatpush1.xpose.msra.mxu0 0.0
    %908 = vmatprep.mubr.f32.mxu0 0.0
    %909 = vmatmul.mubr.f32.gmra.mrb[0].mxu0 %v839
    %v910 = vpop.f32.mrb[0].mxu0
    %v911 = vadd.f32 %v836, %v910
    %v912 = vpop.f32.mrb[0].mxu0
    %913 = vdwg.mxu0
    %vm914 = vcmask 60416
    %915 = vst.msk [vmem:[#allocation8] sm:$0xf] %vm914, %v911
    // Predicated region
    $region46: #{tpu_custom_call.1} parent=1 // pred_check
      _
    $region47: #{tpu_custom_call.1} parent=1 // pred_check_branch
      %917 = sbr.rel (0) target = $region49
    $region48: #{tpu_custom_call.1} parent=1 // pred_region
      %s919 = ssub.s32 64, 64
      %920 = vsyncadd [#allocation4], %s919
      %s922 = sshll.u32 [#allocation8], 4
      %s923 = int_to_ptr.vmem [resolvable:$true] %s922
      %925 = dma.vmem_to_hbm [thread:$0]  %s923, 64, %s8, [#allocation4]
    $region49: #{tpu_custom_call.1} parent=1 // pred_fallthru
      _
    // Predicated region
    $region50: #{tpu_custom_call.1} parent=1 // pred_check
      _
    $region51: #{tpu_custom_call.1} parent=1 // pred_check_branch
      %927 = sbr.rel (0) target = $region53
    $region52: #{tpu_custom_call.1} parent=1 // pred_region
      %928 = dma.done [#allocation4], 64
    $region53: #{tpu_custom_call.1} parent=1 // pred_fallthru
      _
    %929 = vsyncpa [#allocation3], 1
    %930 = vsyncpa [#allocation6], 1
    %931 = vsyncpa [#allocation4], 1

</llo_original>
